<compile_context>
chip_gen: v7x
topology: tpu7x:2x2x1
jax: 0.10.0
libtpu: 0.0.40
codegen_flags: <defaults>
</compile_context>

<pallas_src>
import numpy as np
import jax
import jax.numpy as jnp
from jax import lax
from jax.experimental import pallas as pl
from jax.experimental.pallas import tpu as pltpu


def build_grid(resolution):
    """Identical semantics to the PyTorch helper; returns (1, H, W, 4) f32."""
    ranges = [np.linspace(0.0, 1.0, num=res) for res in resolution]
    grid = np.meshgrid(*ranges, sparse=False, indexing="ij")
    grid = np.stack(grid, axis=-1)
    grid = np.reshape(grid, [resolution[0], resolution[1], -1])
    grid = np.expand_dims(grid, axis=0).astype(np.float32)
    grid = np.concatenate([grid, 1.0 - grid], axis=-1)  # (1, H, W, 4)
    return jnp.asarray(grid)


def _add_pos_kernel(x_ref, p_ref, o_ref):
    # Works for both layouts:
    #   fast path : x_ref (B, rows, L), p_ref (rows, L)  -> broadcast over batch
    #   tiled path: x_ref (TR, L) (batch squeezed), p_ref (TR, L)
    o_ref[...] = (x_ref[...].astype(jnp.float32)
                  + p_ref[...].astype(jnp.float32)).astype(o_ref.dtype)


def soft_position_embed(inputs, grid, weight, bias):
    """inputs: (B, H, W, hidden) channels-last; grid: (1, H, W, 4);
       weight: (hidden, 4) [PyTorch nn.Linear layout]; bias: (hidden,)."""
    B, H, W, hidden = inputs.shape
    HW = H * W
    n_elem = HW * hidden
    x_dtype = inputs.dtype

    # --- hoist the tiny K=4 linear out of the kernel (done once, not per batch) ---
    proj = (jnp.dot(grid.reshape(HW, 4).astype(jnp.float32),
                    weight.T.astype(jnp.float32),
                    precision=lax.Precision.HIGHEST)
            + bias.astype(jnp.float32))                   # (HW, hidden) f32
    # Halve the positional stream's HBM + VMEM footprint for low-precision inputs.
    proj = proj.reshape(-1).astype(x_dtype)               # (n_elem,)
    x_flat = inputs.reshape(B, n_elem)

    # --- lane-dense layout: pad flattened length to a multiple of 128 lanes ---
    L = 128
    n_pad = ((n_elem + L - 1) // L) * L
    if n_pad != n_elem:
        pad = n_pad - n_elem
        x_flat = jnp.pad(x_flat, ((0, 0), (0, pad)))
        proj = jnp.pad(proj, (0, pad))
    rows = n_pad // L
    x3 = x_flat.reshape(B, rows, L)
    p2 = proj.reshape(rows, L)

    x_item = np.dtype(x_dtype).itemsize
    p_item = np.dtype(p2.dtype).itemsize

    # ---- small-shape fast path: single step, everything resident in VMEM ----
    total_bytes = rows * L * (B * 2 * x_item + p_item)
    if total_bytes <= 8 * 1024 * 1024:
        out = pl.pallas_call(
            _add_pos_kernel,
            out_shape=jax.ShapeDtypeStruct((B, rows, L), x_dtype),
        )(x3, p2)
    else:
        # ---- tiled, double-buffered pipeline ----
        # Budget: 2 buffers x (x tile + out tile + proj tile) <= ~24 MiB so the
        # same tiling is safe on v7x (32 MiB scoped / 64 MiB physical VMEM) and
        # comfortably within v5e/v6e.  Cap at 8192 rows (~4 MiB f32 buffers).
        budget = 24 * 1024 * 1024
        per_row = 2 * L * (2 * x_item + p_item)
        tr_cap = min(8192, max(8, (budget // per_row) // 8 * 8))
        TR = rows if rows <= tr_cap else int(tr_cap)
        n_tiles = pl.cdiv(rows, TR)

        out = pl.pallas_call(
            _add_pos_kernel,
            out_shape=jax.ShapeDtypeStruct((B, rows, L), x_dtype),
            grid_spec=pltpu.PrefetchScalarGridSpec(
                num_scalar_prefetch=0,
                # Batch innermost: the proj block index is unchanged across
                # consecutive steps, so it stays VMEM-resident instead of being
                # re-DMA'd per batch element.
                grid=(n_tiles, B),
                in_specs=[
                    pl.BlockSpec((pl.Squeezed(), TR, L), lambda t, b: (b, t, 0)),
                    pl.BlockSpec((TR, L), lambda t, b: (t, 0)),
                ],
                out_specs=pl.BlockSpec((pl.Squeezed(), TR, L),
                                       lambda t, b: (b, t, 0)),
            ),
            compiler_params=pltpu.CompilerParams(
                # Row axis parallel (megacore splits rows, keeping proj resident
                # per core); batch axis arbitrary.  No effect on 1-TC chips.
                dimension_semantics=("parallel", "arbitrary"),
                vmem_limit_bytes=32 * 1024 * 1024,
            ),
            # Note: input_output_aliases={0: 0} could donate the inputs buffer
            # (no bandwidth change, just less HBM allocation); left off to keep
            # the original inputs live for the reference check below.
        )(x3, p2)

    out = out.reshape(B, n_pad)[:, :n_elem]
    return out.reshape(B, H, W, hidden)


if __name__ == "__main__":
    key = jax.random.PRNGKey(0)

    def reference(inputs, grid, weight, bias):
        proj = jnp.einsum("ohwc,kc->ohwk", grid, weight,
                          precision=lax.Precision.HIGHEST) + bias
        return inputs + proj

    configs = [
        (2, 16, 16, 32),    # demo shape -> small-shape fast path (single VMEM step)
        (2, 10, 10, 24),    # n_elem % 128 != 0 -> exercises lane-padding path
        (2, 128, 128, 64),  # larger shape -> exercises the tiled/pipelined path
    ]
    for (B, H, W, hidden) in configs:
        key, k_x, k_w, k_b = jax.random.split(key, 4)
        inputs = jax.random.normal(k_x, (B, H, W, hidden), dtype=jnp.float32)
        # Deterministic "Linear(4, hidden)" params (synthetic init, no checkpoint).
        weight = jax.random.normal(k_w, (hidden, 4), dtype=jnp.float32) * 0.5
        bias = jax.random.normal(k_b, (hidden,), dtype=jnp.float32) * 0.1
        pos_grid = build_grid((H, W))  # (1, H, W, 4)

        out = jax.block_until_ready(
            soft_position_embed(inputs, pos_grid, weight, bias))
        ref = reference(inputs, pos_grid, weight, bias)
        assert out.shape == (B, H, W, hidden)
        np.testing.assert_allclose(np.asarray(out), np.asarray(ref),
                                   rtol=1e-5, atol=1e-5)

    print("KERNEL_OK")
</pallas_src>

<mosaic_0001>
module attributes {stable_mosaic.version = 11 : i64} {
  func.func @_add_pos_kernel(%arg0: memref<2x64x128xf32, #tpu.memory_space<vmem>>, %arg1: memref<64x128xf32, #tpu.memory_space<vmem>>, %arg2: memref<2x64x128xf32, #tpu.memory_space<vmem>>) attributes {dimension_semantics = [], scalar_prefetch = 0 : i64, scratch_operands = 0 : i64, tpu.core_type = #tpu.core_type<tc>} {
    %c0 = arith.constant 0 : index
    %c0_0 = arith.constant 0 : index
    %c0_1 = arith.constant 0 : index
    %0 = vector.load %arg0[%c0, %c0_0, %c0_1] : memref<2x64x128xf32, #tpu.memory_space<vmem>>, vector<2x64x128xf32>
    %c0_2 = arith.constant 0 : index
    %c0_3 = arith.constant 0 : index
    %1 = vector.load %arg1[%c0_2, %c0_3] : memref<64x128xf32, #tpu.memory_space<vmem>>, vector<64x128xf32>
    %2 = vector.shape_cast %1 : vector<64x128xf32> to vector<1x64x128xf32>
    %3 = vector.broadcast %2 : vector<1x64x128xf32> to vector<2x64x128xf32>
    %4 = arith.addf %0, %3 : vector<2x64x128xf32>
    %c0_4 = arith.constant 0 : index
    %c0_5 = arith.constant 0 : index
    %c0_6 = arith.constant 0 : index
    %5 = vector.load %arg2[%c0_4, %c0_5, %c0_6] : memref<2x64x128xf32, #tpu.memory_space<vmem>>, vector<2x64x128xf32>
    tpu.vector_store %arg2[%c0_4, %c0_5, %c0_6], %4 {strides = array<i32>} : memref<2x64x128xf32, #tpu.memory_space<vmem>>, vector<2x64x128xf32>,
    return
  }
}

</mosaic_0001>

<llo_original>
// kernel: tpu_custom_call.1
$region0: #{tpu_custom_call.1}
  #allocation0 [shape = 'u32[]', space=smem, size = 0x4, offset = 0x4, fixed_abs, tag = 'smem constant byte address 0x4 - core index']
  #allocation1 [shape = 'u32[144,128]{1,0:T(1,128)}', space=vmem, size = 0x12000, scoped, tag = 'internal scratch']
  %s0 = inlined_call_operand.hbm [shape: f32[2,64,128], index: 0, kind: input, shape index: {}]
  %s1 = inlined_call_operand.hbm [shape: f32[64,128], index: 1, kind: input, shape index: {}]
  %s2 = inlined_call_operand.hbm [shape: f32[2,64,128], index: 2, kind: output, shape index: {}]
  %s3 = sld [smem:[#allocation0]]
  $region26: #{tpu_custom_call.1} parent=0
    _
  %s5 = ssub.s32 1, %s3
  %s6 = scalar_select 0, %s5, %s3
  $region1: #{tpu_custom_call.1} parent=0
    #allocation2 [shape = 'u8[65536]{0}', space=vmem, size = 0x10000, scoped, tag = 'input window, operand 0, single buffered']
    #allocation3 [shape = 's32[1]{0}', space=sflag, size = 0x4, scoped, tag = 'scoped memory for tpu_custom_call.1']
    #allocation4 [shape = 's32[1]{0}', space=sflag, size = 0x4, scoped, tag = 'scoped memory for tpu_custom_call.1']
    #allocation5 [shape = 'u8[32768]{0}', space=vmem, size = 0x8000, scoped, tag = 'input window, operand 1, single buffered']
    #allocation6 [shape = 's32[1]{0}', space=sflag, size = 0x4, scoped, tag = 'scoped memory for tpu_custom_call.1']
    #allocation7 [shape = 'u8[65536]{0}', space=vmem, size = 0x10000, scoped, tag = 'output window, operand 0, single buffered']
    %7 = vsyncpa [#allocation3], 0
    %8 = vsyncpa [#allocation6], 0
    %9 = vsyncpa [#allocation4], 0
    // Predicated region
    $region2: #{tpu_custom_call.1} parent=1 // pred_check
      _
    $region3: #{tpu_custom_call.1} parent=1 // pred_check_branch
      %11 = sbr.rel (0) target = $region5
    $region4: #{tpu_custom_call.1} parent=1 // pred_region
      %s13 = ssub.s32 2048, 2048
      %14 = vsyncadd [#allocation3], %s13
      %s15 = sshll.u32 [#allocation2], 4
      %s16 = int_to_ptr.vmem [resolvable:$true] %s15
      %21 = dma.hbm_to_vmem [thread:$0]  %s0, 2048, %s16, [#allocation3], 128, 128, 8
    $region5: #{tpu_custom_call.1} parent=1 // pred_fallthru
      _
    // Predicated region
    $region6: #{tpu_custom_call.1} parent=1 // pred_check
      _
    $region7: #{tpu_custom_call.1} parent=1 // pred_check_branch
      %23 = sbr.rel (0) target = $region9
    $region8: #{tpu_custom_call.1} parent=1 // pred_region
      %s25 = ssub.s32 1024, 1024
      %26 = vsyncadd [#allocation6], %s25
      %s27 = sshll.u32 [#allocation5], 4
      %s28 = int_to_ptr.vmem [resolvable:$true] %s27
      %33 = dma.hbm_to_vmem [thread:$0]  %s1, 1024, %s28, [#allocation6], 128, 128, 8
    $region9: #{tpu_custom_call.1} parent=1 // pred_fallthru
      _
    // Predicated region
    $region10: #{tpu_custom_call.1} parent=1 // pred_check
      _
    $region11: #{tpu_custom_call.1} parent=1 // pred_check_branch
      %35 = sbr.rel (0) target = $region13
    $region12: #{tpu_custom_call.1} parent=1 // pred_region
      %36 = dma.done [#allocation3], 2048
    $region13: #{tpu_custom_call.1} parent=1 // pred_fallthru
      _
    // Predicated region
    $region14: #{tpu_custom_call.1} parent=1 // pred_check
      _
    $region15: #{tpu_custom_call.1} parent=1 // pred_check_branch
      %38 = sbr.rel (0) target = $region17
    $region16: #{tpu_custom_call.1} parent=1 // pred_region
      %39 = dma.done [#allocation6], 1024
    $region17: #{tpu_custom_call.1} parent=1 // pred_fallthru
      _
    %v40 = vld [vmem:[#allocation2] sm:$0xff]
    %v41 = vld [vmem:[#allocation2 + $0x8] sm:$0xff]
    %v42 = vld [vmem:[#allocation2 + $0x10] sm:$0xff]
    %v43 = vld [vmem:[#allocation2 + $0x18] sm:$0xff]
    %v44 = vld [vmem:[#allocation2 + $0x20] sm:$0xff]
    %v45 = vld [vmem:[#allocation2 + $0x28] sm:$0xff]
    %v46 = vld [vmem:[#allocation2 + $0x30] sm:$0xff]
    %v47 = vld [vmem:[#allocation2 + $0x38] sm:$0xff]
    %v48 = vld [vmem:[#allocation2 + $0x40] sm:$0xff]
    %v49 = vld [vmem:[#allocation2 + $0x48] sm:$0xff]
    %v50 = vld [vmem:[#allocation2 + $0x50] sm:$0xff]
    %v51 = vld [vmem:[#allocation2 + $0x58] sm:$0xff]
    %v52 = vld [vmem:[#allocation2 + $0x60] sm:$0xff]
    %v53 = vld [vmem:[#allocation2 + $0x68] sm:$0xff]
    %v54 = vld [vmem:[#allocation2 + $0x70] sm:$0xff]
    %v55 = vld [vmem:[#allocation2 + $0x78] sm:$0xff]
    %v56 = vld [vmem:[#allocation5] sm:$0xff]
    %v57 = vld [vmem:[#allocation5 + $0x8] sm:$0xff]
    %v58 = vld [vmem:[#allocation5 + $0x10] sm:$0xff]
    %v59 = vld [vmem:[#allocation5 + $0x18] sm:$0xff]
    %v60 = vld [vmem:[#allocation5 + $0x20] sm:$0xff]
    %v61 = vld [vmem:[#allocation5 + $0x28] sm:$0xff]
    %v62 = vld [vmem:[#allocation5 + $0x30] sm:$0xff]
    %v63 = vld [vmem:[#allocation5 + $0x38] sm:$0xff]
    %v64 = vadd.f32 %v40, %v56
    %v65 = vadd.f32 %v41, %v57
    %v66 = vadd.f32 %v42, %v58
    %v67 = vadd.f32 %v43, %v59
    %v68 = vadd.f32 %v44, %v60
    %v69 = vadd.f32 %v45, %v61
    %v70 = vadd.f32 %v46, %v62
    %v71 = vadd.f32 %v47, %v63
    %v72 = vadd.f32 %v48, %v56
    %v73 = vadd.f32 %v49, %v57
    %v74 = vadd.f32 %v50, %v58
    %v75 = vadd.f32 %v51, %v59
    %v76 = vadd.f32 %v52, %v60
    %v77 = vadd.f32 %v53, %v61
    %v78 = vadd.f32 %v54, %v62
    %v79 = vadd.f32 %v55, %v63
    %80 = vst [vmem:[#allocation7] sm:$0xff] %v64
    %81 = vst [vmem:[#allocation7 + $0x8] sm:$0xff] %v65
    %82 = vst [vmem:[#allocation7 + $0x10] sm:$0xff] %v66
    %83 = vst [vmem:[#allocation7 + $0x18] sm:$0xff] %v67
    %84 = vst [vmem:[#allocation7 + $0x20] sm:$0xff] %v68
    %85 = vst [vmem:[#allocation7 + $0x28] sm:$0xff] %v69
    %86 = vst [vmem:[#allocation7 + $0x30] sm:$0xff] %v70
    %87 = vst [vmem:[#allocation7 + $0x38] sm:$0xff] %v71
    %88 = vst [vmem:[#allocation7 + $0x40] sm:$0xff] %v72
    %89 = vst [vmem:[#allocation7 + $0x48] sm:$0xff] %v73
    %90 = vst [vmem:[#allocation7 + $0x50] sm:$0xff] %v74
    %91 = vst [vmem:[#allocation7 + $0x58] sm:$0xff] %v75
    %92 = vst [vmem:[#allocation7 + $0x60] sm:$0xff] %v76
    %93 = vst [vmem:[#allocation7 + $0x68] sm:$0xff] %v77
    %94 = vst [vmem:[#allocation7 + $0x70] sm:$0xff] %v78
    %95 = vst [vmem:[#allocation7 + $0x78] sm:$0xff] %v79
    // Predicated region
    $region18: #{tpu_custom_call.1} parent=1 // pred_check
      _
    $region19: #{tpu_custom_call.1} parent=1 // pred_check_branch
      %97 = sbr.rel (0) target = $region21
    $region20: #{tpu_custom_call.1} parent=1 // pred_region
      %s99 = ssub.s32 2048, 2048
      %100 = vsyncadd [#allocation4], %s99
      %s101 = sshll.u32 [#allocation7], 4
      %s102 = int_to_ptr.vmem [resolvable:$true] %s101
      %107 = dma.vmem_to_hbm [thread:$0]  %s102, 2048, %s2, [#allocation4], 128, 128, 8
    $region21: #{tpu_custom_call.1} parent=1 // pred_fallthru
      _
    // Predicated region
    $region22: #{tpu_custom_call.1} parent=1 // pred_check
      _
    $region23: #{tpu_custom_call.1} parent=1 // pred_check_branch
      %109 = sbr.rel (0) target = $region25
    $region24: #{tpu_custom_call.1} parent=1 // pred_region
      %110 = dma.done [#allocation4], 2048
    $region25: #{tpu_custom_call.1} parent=1 // pred_fallthru
      _
    %111 = vsyncpa [#allocation3], 1
    %112 = vsyncpa [#allocation6], 1
    %113 = vsyncpa [#allocation4], 1

</llo_original>
